<compile_context>
chip_gen: v7x
topology: tpu7x:2x2x1
jax: 0.10.0
libtpu: 0.0.40
codegen_flags: <defaults>
</compile_context>

<pallas_src>
import jax
import jax.numpy as jnp
from jax.experimental import pallas as pl
from jax.experimental.pallas import tpu as pltpu


# ----------------------------- Pallas kernel --------------------------------

def _filter_fused_kernel(x_ref, w1_ref, b1_ref, w2_ref, b2_ref, o_ref):
    """o = sigmoid(leaky_relu(x @ W1 + b1) @ w2 + b2), all resident in VMEM."""
    # Layer 1: (tn, Fp) @ (Fp, 512). x arrives f32 and is cast to bf16
    # in-register; weights are bf16; accumulate in f32 on the MXU.
    h = jnp.dot(x_ref[...].astype(jnp.bfloat16), w1_ref[...],
                preferred_element_type=jnp.float32)            # (tn, 512) f32
    h = h + b1_ref[...]
    h = jnp.maximum(h, 0.01 * h)        # nn.LeakyReLU() default slope 0.01

    # Layer 2: 512 -> 1 head.  A padded (512,128) MXU matmul would compute
    # 127 garbage columns; instead do a VPU multiply + lane reduction (XLU),
    # producing a lean (tn, 1) column.
    y = jnp.sum(h * w2_ref[...], axis=-1, keepdims=True)       # (tn, 1) f32
    y = y + b2_ref[...]

    # sigmoid = 1 / (1 + exp(-y)); exp and approx reciprocal both hit the EUP.
    o_ref[...] = pl.reciprocal(1.0 + jnp.exp(-y), approx=True).astype(o_ref.dtype)


# ------------------------------- wrapper -------------------------------------

def _round_up(x, m):
    return (x + m - 1) // m * m


def filter_module(x, params, *, row_tile=512):
    """Filter_Module forward.  x: (B, T, F) float32 -> (B, T, 1) float32."""
    B, T, F = x.shape
    w1, b1, w2, b2 = params["w1"], params["b1"], params["w2"], params["b2"]
    H1 = w1.shape[1]                 # 512 (hardcoded in the PyTorch module)

    N = B * T
    F_pad = _round_up(F, 128)
    if N <= row_tile:
        N_pad = _round_up(N, 16)
        tn = N_pad
    else:
        N_pad = _round_up(N, row_tile)
        tn = row_tile

    # x stays f32 in HBM (no wrapper-side bf16 copy); pad only when needed
    # (typical BaS-Net F = 1024/2048 needs no feature padding).
    x2 = x.reshape(N, F)
    if (N_pad, F_pad) != (N, F):
        x2 = jnp.pad(x2, ((0, N_pad - N), (0, F_pad - F)))

    w1p = w1
    if F_pad != F:
        w1p = jnp.pad(w1p, ((0, F_pad - F), (0, 0)))
    w1p = w1p.astype(jnp.bfloat16)                    # bf16 weight stream
    b1p = b1.reshape(1, H1).astype(jnp.float32)
    w2p = w2.reshape(1, H1).astype(jnp.float32)       # 512->1 head as a row
    b2p = b2.reshape(1, 1).astype(jnp.float32)

    # Grid-invariant operands: single VMEM buffer (no double-buffer waste).
    def _const_spec(shape):
        return pl.BlockSpec(shape, lambda i: (0, 0),
                            pipeline_mode=pl.Buffered(1))

    out = pl.pallas_call(
        _filter_fused_kernel,
        out_shape=jax.ShapeDtypeStruct((N_pad, 1), jnp.float32),
        grid_spec=pltpu.PrefetchScalarGridSpec(
            num_scalar_prefetch=0,
            grid=(N_pad // tn,),
            in_specs=[
                pl.BlockSpec((tn, F_pad), lambda i: (i, 0)),   # x rows (streamed)
                _const_spec((F_pad, H1)),                      # W1 (resident)
                _const_spec((1, H1)),                          # b1
                _const_spec((1, H1)),                          # w2 row
                _const_spec((1, 1)),                           # b2
            ],
            out_specs=pl.BlockSpec((tn, 1), lambda i: (i, 0)),
        ),
        compiler_params=pltpu.CompilerParams(
            dimension_semantics=("parallel",),     # row axis; independent tiles
            vmem_limit_bytes=48 * 1024 * 1024,     # < 64 MiB physical on v7x
        ),
    )(x2, w1p, b1p, w2p, b2p)

    return out[:N].reshape(B, T, 1)


# --------------------------- reference & params -------------------------------

def filter_module_ref(x, params):
    """Pure-JAX f32 reference matching the PyTorch forward."""
    h = jnp.einsum("btf,fh->bth", x, params["w1"]) + params["b1"]
    h = jnp.where(h >= 0, h, 0.01 * h)
    y = jnp.einsum("bth,ho->bto", h, params["w2"]) + params["b2"]
    return jax.nn.sigmoid(y)


def init_params(key, len_feature, filt_hidden=512):
    """Deterministic synthetic parameters stored in matmul layout.

    PyTorch Conv1d weight (Cout, Cin, 1) maps to W = weight[:, :, 0].T of
    shape (Cin, Cout); we sample directly in that layout.
    """
    k0, k1, k2, k3 = jax.random.split(key, 4)
    s = 0.02
    return {
        "w1": s * jax.random.normal(k0, (len_feature, filt_hidden), jnp.float32),
        "b1": s * jax.random.normal(k1, (filt_hidden,), jnp.float32),
        "w2": s * jax.random.normal(k2, (filt_hidden, 1), jnp.float32),
        "b2": s * jax.random.normal(k3, (1,), jnp.float32),
    }


# ---------------------------------- main --------------------------------------

if __name__ == "__main__":
    B = 2
    T = 16            # temporal length (num_segments)
    len_feature = 32

    key = jax.random.PRNGKey(0)
    kx, kp = jax.random.split(key)
    x = jax.random.normal(kx, (B, T, len_feature), jnp.float32)
    params = init_params(kp, len_feature)

    ref = filter_module_ref(x, params)

    # Single-tile path (grid collapses to one step).
    out = jax.block_until_ready(filter_module(x, params))
    assert out.shape == (B, T, 1)
    assert jnp.all(jnp.isfinite(out))
    assert jnp.all((out >= -1e-3) & (out <= 1.0 + 1e-3))
    # bf16 weight stream + approx reciprocal -> loose tolerance vs f32 reference.
    assert jnp.allclose(out, ref, atol=2e-2, rtol=2e-2)

    # Multi-step grid path (exercises streaming + single-buffered weights).
    out2 = jax.block_until_ready(filter_module(x, params, row_tile=16))
    assert out2.shape == (B, T, 1)
    assert jnp.allclose(out2, ref, atol=2e-2, rtol=2e-2)

    print("KERNEL_OK")
</pallas_src>

<mosaic_0001>
module attributes {stable_mosaic.version = 11 : i64} {
  func.func @_filter_fused_kernel(%arg0: i32, %arg1: memref<32x128xf32, #tpu.memory_space<vmem>>, %arg2: memref<128x512xbf16, #tpu.memory_space<vmem>>, %arg3: memref<1x512xf32, #tpu.memory_space<vmem>>, %arg4: memref<1x512xf32, #tpu.memory_space<vmem>>, %arg5: memref<1x1xf32, #tpu.memory_space<vmem>>, %arg6: memref<32x1xf32, #tpu.memory_space<vmem>>) attributes {dimension_semantics = [#tpu.dimension_semantics<parallel>], iteration_bounds = array<i64: 1>, scalar_prefetch = 0 : i64, scratch_operands = 0 : i64, tpu.core_type = #tpu.core_type<tc>, window_params = [{transform_indices = @transform_0, window_bounds = array<i64: 32, 128>}, {pipeline_mode = #tpu.pipeline_mode<synchronous>, transform_indices = @transform_1, window_bounds = array<i64: 128, 512>}, {pipeline_mode = #tpu.pipeline_mode<synchronous>, transform_indices = @transform_2, window_bounds = array<i64: 1, 512>}, {pipeline_mode = #tpu.pipeline_mode<synchronous>, transform_indices = @transform_3, window_bounds = array<i64: 1, 512>}, {pipeline_mode = #tpu.pipeline_mode<synchronous>, transform_indices = @transform_4, window_bounds = array<i64: 1, 1>}, {transform_indices = @transform_5, window_bounds = array<i64: 32, 1>}]} {
    %c0 = arith.constant 0 : index
    %c0_0 = arith.constant 0 : index
    %0 = vector.load %arg1[%c0, %c0_0] : memref<32x128xf32, #tpu.memory_space<vmem>>, vector<32x128xf32>
    %1 = arith.truncf %0 : vector<32x128xf32> to vector<32x128xbf16>
    %c0_1 = arith.constant 0 : index
    %c0_2 = arith.constant 0 : index
    %2 = vector.load %arg2[%c0_1, %c0_2] : memref<128x512xbf16, #tpu.memory_space<vmem>>, vector<128x512xbf16>
    %cst = arith.constant dense<0.000000e+00> : vector<32x512xf32>
    %3 = tpu.matmul %1, %2, %cst {dimension_numbers = #tpu.dot_dimension_numbers<[1], [0], [0], [1], [0, 0, 1, 1], [], []>} : vector<32x128xbf16>, vector<128x512xbf16>, vector<32x512xf32> -> vector<32x512xf32>
    %c0_3 = arith.constant 0 : index
    %c0_4 = arith.constant 0 : index
    %4 = vector.load %arg3[%c0_3, %c0_4] : memref<1x512xf32, #tpu.memory_space<vmem>>, vector<1x512xf32>
    %5 = vector.broadcast %4 : vector<1x512xf32> to vector<32x512xf32>
    %6 = arith.addf %3, %5 : vector<32x512xf32>
    %cst_5 = arith.constant 0.00999999977 : f32
    %7 = vector.broadcast %cst_5 : f32 to vector<32x512xf32>
    %8 = arith.mulf %7, %6 : vector<32x512xf32>
    %9 = arith.maximumf %6, %8 : vector<32x512xf32>
    %c0_6 = arith.constant 0 : index
    %c0_7 = arith.constant 0 : index
    %10 = vector.load %arg4[%c0_6, %c0_7] : memref<1x512xf32, #tpu.memory_space<vmem>>, vector<1x512xf32>
    %11 = vector.broadcast %10 : vector<1x512xf32> to vector<32x512xf32>
    %12 = arith.mulf %9, %11 : vector<32x512xf32>
    %cst_8 = arith.constant dense<0.000000e+00> : vector<32xf32>
    %13 = vector.multi_reduction <add>, %12, %cst_8 [1] : vector<32x512xf32> to vector<32xf32>
    %14 = vector.shape_cast %13 : vector<32xf32> to vector<32x1xf32>
    %c0_9 = arith.constant 0 : index
    %c0_10 = arith.constant 0 : index
    %15 = vector.load %arg5[%c0_9, %c0_10] : memref<1x1xf32, #tpu.memory_space<vmem>>, vector<1x1xf32>
    %16 = vector.broadcast %15 : vector<1x1xf32> to vector<32x1xf32>
    %17 = arith.addf %14, %16 : vector<32x1xf32>
    %cst_11 = arith.constant 0.000000e+00 : f32
    %18 = vector.broadcast %cst_11 : f32 to vector<32x1xf32>
    %19 = arith.subf %18, %17 : vector<32x1xf32>
    %20 = math.exp %19 : vector<32x1xf32>
    %cst_12 = arith.constant 1.000000e+00 : f32
    %21 = vector.broadcast %cst_12 : f32 to vector<32x1xf32>
    %22 = arith.addf %21, %20 : vector<32x1xf32>
    %23 = tpu.reciprocal %22 {approx = true} : vector<32x1xf32> -> vector<32x1xf32>
    %c0_13 = arith.constant 0 : index
    %c0_14 = arith.constant 0 : index
    %24 = vector.load %arg6[%c0_13, %c0_14] : memref<32x1xf32, #tpu.memory_space<vmem>>, vector<32x1xf32>
    tpu.vector_store %arg6[%c0_13, %c0_14], %23 {strides = array<i32>} : memref<32x1xf32, #tpu.memory_space<vmem>>, vector<32x1xf32>,
    return
  }
  func.func @transform_0(%arg0: i32) -> (i32, i32) {
    %c0_i32 = arith.constant 0 : i32
    %c0_i32_0 = arith.constant 0 : i32
    return %arg0, %c0_i32 : i32, i32
  }
  func.func @transform_1(%arg0: i32) -> (i32, i32) {
    %c0_i32 = arith.constant 0 : i32
    %c0_i32_0 = arith.constant 0 : i32
    %c0_i32_1 = arith.constant 0 : i32
    return %c0_i32, %c0_i32_0 : i32, i32
  }
  func.func @transform_2(%arg0: i32) -> (i32, i32) {
    %c0_i32 = arith.constant 0 : i32
    %c0_i32_0 = arith.constant 0 : i32
    %c0_i32_1 = arith.constant 0 : i32
    return %c0_i32, %c0_i32_0 : i32, i32
  }
  func.func @transform_3(%arg0: i32) -> (i32, i32) {
    %c0_i32 = arith.constant 0 : i32
    %c0_i32_0 = arith.constant 0 : i32
    %c0_i32_1 = arith.constant 0 : i32
    return %c0_i32, %c0_i32_0 : i32, i32
  }
  func.func @transform_4(%arg0: i32) -> (i32, i32) {
    %c0_i32 = arith.constant 0 : i32
    %c0_i32_0 = arith.constant 0 : i32
    %c0_i32_1 = arith.constant 0 : i32
    return %c0_i32, %c0_i32_0 : i32, i32
  }
  func.func @transform_5(%arg0: i32) -> (i32, i32) {
    %c0_i32 = arith.constant 0 : i32
    %c0_i32_0 = arith.constant 0 : i32
    return %arg0, %c0_i32 : i32, i32
  }
}

</mosaic_0001>

<llo_original>
// kernel: tpu_custom_call.1
$region0: #{tpu_custom_call.1}
  #allocation0 [shape = 'u32[]', space=smem, size = 0x4, offset = 0x4, fixed_abs, tag = 'smem constant byte address 0x4 - core index']
  #allocation1 [shape = 'u32[144,128]{1,0:T(1,128)}', space=vmem, size = 0x12000, scoped, tag = 'internal scratch']
  #allocation2 [shape = 'f32[1,1]{1,0:T(1,128)S(1)}', space=vmem, size = 0x200, scoped, tag = 'scoped memory for tpu_custom_call.1']
  %s0 = inlined_call_operand.hbm [shape: f32[32,128], index: 0, kind: input, shape index: {}]
  %s1 = inlined_call_operand.hbm [shape: bf16[128,512], index: 1, kind: input, shape index: {}]
  %s2 = inlined_call_operand.vmem [shape: f32[1,512], index: 2, kind: input, shape index: {}]
  %s3 = inlined_call_operand.vmem [shape: f32[1,512], index: 3, kind: input, shape index: {}]
  %s4 = inlined_call_operand.<no memory space> [shape: f32[1,1], index: 4, kind: input, shape index: {}]
  %s5 = inlined_call_operand.vmem [shape: f32[32,1], index: 5, kind: output, shape index: {}]
  %s6 = sld [smem:[#allocation0]]
  $region38: #{tpu_custom_call.1} parent=0
    _
  %s8 = ssub.s32 1, %s6
  %s9 = scalar_select 0, %s8, %s6
  %v10 = vstv %s4
  %11 = vst [vmem:[#allocation2] sm:$0x1] %v10
  $region1: #{tpu_custom_call.1} parent=0
    #allocation3 [shape = 'u8[16384]{0}', space=vmem, size = 0x4000, scoped, tag = 'input window, operand 0, single buffered']
    #allocation4 [shape = 's32[1]{0}', space=sflag, size = 0x4, scoped, tag = 'scoped memory for tpu_custom_call.1']
    #allocation5 [shape = 'u8[131072]{0}', space=vmem, size = 0x20000, scoped, tag = 'input window, operand 1, single buffered']
    #allocation6 [shape = 's32[1]{0}', space=sflag, size = 0x4, scoped, tag = 'scoped memory for tpu_custom_call.1']
    %12 = vsyncpa [#allocation4], 0
    %13 = vsyncpa [#allocation6], 0
    // Predicated region
    $region2: #{tpu_custom_call.1} parent=1 // pred_check
      _
    $region3: #{tpu_custom_call.1} parent=1 // pred_check_branch
      %15 = sbr.rel (0) target = $region5
    $region4: #{tpu_custom_call.1} parent=1 // pred_region
      %s17 = ssub.s32 512, 512
      %18 = vsyncadd [#allocation4], %s17
      %s19 = sshll.u32 [#allocation3], 4
      %s20 = int_to_ptr.vmem [resolvable:$true] %s19
      %25 = dma.hbm_to_vmem [thread:$0]  %s0, 512, %s20, [#allocation4], 128, 128, 8
    $region5: #{tpu_custom_call.1} parent=1 // pred_fallthru
      _
    // Predicated region
    $region6: #{tpu_custom_call.1} parent=1 // pred_check
      _
    $region7: #{tpu_custom_call.1} parent=1 // pred_check_branch
      %27 = sbr.rel (0) target = $region9
    $region8: #{tpu_custom_call.1} parent=1 // pred_region
      %s29 = ssub.s32 4096, 4096
      %30 = vsyncadd [#allocation6], %s29
      %s31 = sshll.u32 [#allocation5], 4
      %s32 = int_to_ptr.vmem [resolvable:$true] %s31
      %37 = dma.hbm_to_vmem [thread:$0]  %s1, 4096, %s32, [#allocation6], 256, 256, 16
    $region9: #{tpu_custom_call.1} parent=1 // pred_fallthru
      _
    // Predicated region
    $region10: #{tpu_custom_call.1} parent=1 // pred_check
      _
    $region11: #{tpu_custom_call.1} parent=1 // pred_check_branch
      %39 = sbr.rel (0) target = $region13
    $region12: #{tpu_custom_call.1} parent=1 // pred_region
      _
    $region13: #{tpu_custom_call.1} parent=1 // pred_fallthru
      _
    // Predicated region
    $region14: #{tpu_custom_call.1} parent=1 // pred_check
      _
    $region15: #{tpu_custom_call.1} parent=1 // pred_check_branch
      %41 = sbr.rel (0) target = $region17
    $region16: #{tpu_custom_call.1} parent=1 // pred_region
      _
    $region17: #{tpu_custom_call.1} parent=1 // pred_fallthru
      _
    // Predicated region
    $region18: #{tpu_custom_call.1} parent=1 // pred_check
      _
    $region19: #{tpu_custom_call.1} parent=1 // pred_check_branch
      %43 = sbr.rel (0) target = $region21
    $region20: #{tpu_custom_call.1} parent=1 // pred_region
      _
    $region21: #{tpu_custom_call.1} parent=1 // pred_fallthru
      _
    // Predicated region
    $region22: #{tpu_custom_call.1} parent=1 // pred_check
      _
    $region23: #{tpu_custom_call.1} parent=1 // pred_check_branch
      %45 = sbr.rel (0) target = $region25
    $region24: #{tpu_custom_call.1} parent=1 // pred_region
      %46 = dma.done [#allocation4], 512
    $region25: #{tpu_custom_call.1} parent=1 // pred_fallthru
      _
    // Predicated region
    $region26: #{tpu_custom_call.1} parent=1 // pred_check
      _
    $region27: #{tpu_custom_call.1} parent=1 // pred_check_branch
      %48 = sbr.rel (0) target = $region29
    $region28: #{tpu_custom_call.1} parent=1 // pred_region
      %49 = dma.done [#allocation6], 4096
    $region29: #{tpu_custom_call.1} parent=1 // pred_fallthru
      _
    %v51 = vld [vmem:[#allocation3] sm:$0xff]
    %v52 = vld [vmem:[#allocation3 + $0x8] sm:$0xff]
    %v53 = vld [vmem:[#allocation3 + $0x10] sm:$0xff]
    %v54 = vld [vmem:[#allocation3 + $0x18] sm:$0xff]
    %v55 = vpack.c.bf16 %v52, %v51
    %v56 = vpack.c.bf16 %v54, %v53
    %v57 = vld [vmem:[#allocation5] sm:$0xff]
    %v58 = vld [vmem:[#allocation5 + $0x8] sm:$0xff]
    %v59 = vld [vmem:[#allocation5 + $0x10] sm:$0xff]
    %v60 = vld [vmem:[#allocation5 + $0x18] sm:$0xff]
    %v61 = vld [vmem:[#allocation5 + $0x20] sm:$0xff]
    %v62 = vld [vmem:[#allocation5 + $0x28] sm:$0xff]
    %v63 = vld [vmem:[#allocation5 + $0x30] sm:$0xff]
    %v64 = vld [vmem:[#allocation5 + $0x38] sm:$0xff]
    %v65 = vld [vmem:[#allocation5 + $0x40] sm:$0xff]
    %v66 = vld [vmem:[#allocation5 + $0x48] sm:$0xff]
    %v67 = vld [vmem:[#allocation5 + $0x50] sm:$0xff]
    %v68 = vld [vmem:[#allocation5 + $0x58] sm:$0xff]
    %v69 = vld [vmem:[#allocation5 + $0x60] sm:$0xff]
    %v70 = vld [vmem:[#allocation5 + $0x68] sm:$0xff]
    %v71 = vld [vmem:[#allocation5 + $0x70] sm:$0xff]
    %v72 = vld [vmem:[#allocation5 + $0x78] sm:$0xff]
    %v73 = vld [vmem:[#allocation5 + $0x80] sm:$0xff]
    %v74 = vld [vmem:[#allocation5 + $0x88] sm:$0xff]
    %v75 = vld [vmem:[#allocation5 + $0x90] sm:$0xff]
    %v76 = vld [vmem:[#allocation5 + $0x98] sm:$0xff]
    %v77 = vld [vmem:[#allocation5 + $0xa0] sm:$0xff]
    %v78 = vld [vmem:[#allocation5 + $0xa8] sm:$0xff]
    %v79 = vld [vmem:[#allocation5 + $0xb0] sm:$0xff]
    %v80 = vld [vmem:[#allocation5 + $0xb8] sm:$0xff]
    %v81 = vld [vmem:[#allocation5 + $0xc0] sm:$0xff]
    %v82 = vld [vmem:[#allocation5 + $0xc8] sm:$0xff]
    %v83 = vld [vmem:[#allocation5 + $0xd0] sm:$0xff]
    %v84 = vld [vmem:[#allocation5 + $0xd8] sm:$0xff]
    %v85 = vld [vmem:[#allocation5 + $0xe0] sm:$0xff]
    %v86 = vld [vmem:[#allocation5 + $0xe8] sm:$0xff]
    %v87 = vld [vmem:[#allocation5 + $0xf0] sm:$0xff]
    %v88 = vld [vmem:[#allocation5 + $0xf8] sm:$0xff]
    %v89 = vld [vmem:[%s2] sm:$0xf]
    %v91 = vlaneseq
    %v92 = vshrl.u32 %v91, 7
    %v93 = vsub.s32 0, %v92
    %v94 = vrot.slane %v89, %v93
    %v95 = vlaneseq
    %v96 = vshrl.u32 %v95, 7
    %v97 = vsub.s32 1, %v96
    %v98 = vrot.slane %v89, %v97
    %v99 = vlaneseq
    %v100 = vshrl.u32 %v99, 7
    %v101 = vsub.s32 2, %v100
    %v102 = vrot.slane %v89, %v101
    %v103 = vlaneseq
    %v104 = vshrl.u32 %v103, 7
    %v105 = vsub.s32 3, %v104
    %v106 = vrot.slane %v89, %v105
    %v143 = vunpack.c.l.b16 %v57
    %v144 = vunpack.c.h.b16 %v57
    %v145 = vunpack.c.l.b16 %v58
    %v146 = vunpack.c.h.b16 %v58
    %v147 = vunpack.c.l.b16 %v59
    %v148 = vunpack.c.h.b16 %v59
    %v149 = vunpack.c.l.b16 %v60
    %v150 = vunpack.c.h.b16 %v60
    %v151 = vunpack.c.l.b16 %v61
    %v152 = vunpack.c.h.b16 %v61
    %v153 = vunpack.c.l.b16 %v62
    %v154 = vunpack.c.h.b16 %v62
    %v155 = vunpack.c.l.b16 %v63
    %v156 = vunpack.c.h.b16 %v63
    %v157 = vunpack.c.l.b16 %v64
    %v158 = vunpack.c.h.b16 %v64
    %v159 = vunpack.c.l.b16 %v65
    %v160 = vunpack.c.h.b16 %v65
    %v161 = vunpack.c.l.b16 %v66
    %v162 = vunpack.c.h.b16 %v66
    %v163 = vunpack.c.l.b16 %v67
    %v164 = vunpack.c.h.b16 %v67
    %v165 = vunpack.c.l.b16 %v68
    %v166 = vunpack.c.h.b16 %v68
    %v167 = vunpack.c.l.b16 %v69
    %v168 = vunpack.c.h.b16 %v69
    %v169 = vunpack.c.l.b16 %v70
    %v170 = vunpack.c.h.b16 %v70
    %v171 = vunpack.c.l.b16 %v71
    %v172 = vunpack.c.h.b16 %v71
    %v173 = vunpack.c.l.b16 %v72
    %v174 = vunpack.c.h.b16 %v72
    %v175 = vunpack.c.l.b16 %v73
    %v176 = vunpack.c.h.b16 %v73
    %v177 = vunpack.c.l.b16 %v74
    %v178 = vunpack.c.h.b16 %v74
    %v179 = vunpack.c.l.b16 %v75
    %v180 = vunpack.c.h.b16 %v75
    %v181 = vunpack.c.l.b16 %v76
    %v182 = vunpack.c.h.b16 %v76
    %v183 = vunpack.c.l.b16 %v77
    %v184 = vunpack.c.h.b16 %v77
    %v185 = vunpack.c.l.b16 %v78
    %v186 = vunpack.c.h.b16 %v78
    %v187 = vunpack.c.l.b16 %v79
    %v188 = vunpack.c.h.b16 %v79
    %v189 = vunpack.c.l.b16 %v80
    %v190 = vunpack.c.h.b16 %v80
    %v191 = vunpack.c.l.b16 %v81
    %v192 = vunpack.c.h.b16 %v81
    %v193 = vunpack.c.l.b16 %v82
    %v194 = vunpack.c.h.b16 %v82
    %v195 = vunpack.c.l.b16 %v83
    %v196 = vunpack.c.h.b16 %v83
    %v197 = vunpack.c.l.b16 %v84
    %v198 = vunpack.c.h.b16 %v84
    %v199 = vunpack.c.l.b16 %v85
    %v200 = vunpack.c.h.b16 %v85
    %v201 = vunpack.c.l.b16 %v86
    %v202 = vunpack.c.h.b16 %v86
    %v203 = vunpack.c.l.b16 %v87
    %v204 = vunpack.c.h.b16 %v87
    %v205 = vunpack.c.l.b16 %v88
    %v206 = vunpack.c.h.b16 %v88
    %v207 = vpack.c.b16 %v147, %v143
    %v208 = vpack.c.b16 %v148, %v144
    %v209 = vpack.c.b16 %v149, %v145
    %v210 = vpack.c.b16 %v150, %v146
    %v211 = vpack.c.b16 %v155, %v151
    %v212 = vpack.c.b16 %v156, %v152
    %v213 = vpack.c.b16 %v157, %v153
    %v214 = vpack.c.b16 %v158, %v154
    %v215 = vpack.c.b16 %v163, %v159
    %v216 = vpack.c.b16 %v164, %v160
    %v217 = vpack.c.b16 %v165, %v161
    %v218 = vpack.c.b16 %v166, %v162
    %v219 = vpack.c.b16 %v171, %v167
    %v220 = vpack.c.b16 %v172, %v168
    %v221 = vpack.c.b16 %v173, %v169
    %v222 = vpack.c.b16 %v174, %v170
    %v223 = vpack.c.b16 %v179, %v175
    %v224 = vpack.c.b16 %v180, %v176
    %v225 = vpack.c.b16 %v181, %v177
    %v226 = vpack.c.b16 %v182, %v178
    %v227 = vpack.c.b16 %v187, %v183
    %v228 = vpack.c.b16 %v188, %v184
    %v229 = vpack.c.b16 %v189, %v185
    %v230 = vpack.c.b16 %v190, %v186
    %v231 = vpack.c.b16 %v195, %v191
    %v232 = vpack.c.b16 %v196, %v192
    %v233 = vpack.c.b16 %v197, %v193
    %v234 = vpack.c.b16 %v198, %v194
    %v235 = vpack.c.b16 %v203, %v199
    %v236 = vpack.c.b16 %v204, %v200
    %v237 = vpack.c.b16 %v205, %v201
    %v238 = vpack.c.b16 %v206, %v202
    %271 = vmatprep.subr.bf16.mxu0 %v208
    %272 = vmatpush1.bf16.msra.mxu0 %v207
    %273 = vmatprep.subr.bf16.mxu0 %v212
    %274 = vmatpush1.bf16.msra.mxu0 %v211
    %275 = vmatprep.subr.bf16.mxu0 %v216
    %276 = vmatpush1.bf16.msra.mxu0 %v215
    %277 = vmatprep.subr.bf16.mxu0 %v220
    %278 = vmatpush1.bf16.msra.mxu0 %v219
    %279 = vmatprep.subr.bf16.mxu0 %v224
    %280 = vmatpush1.bf16.msra.mxu0 %v223
    %281 = vmatprep.subr.bf16.mxu0 %v228
    %282 = vmatpush1.bf16.msra.mxu0 %v227
    %283 = vmatprep.subr.bf16.mxu0 %v232
    %284 = vmatpush1.bf16.msra.mxu0 %v231
    %285 = vmatprep.subr.bf16.mxu0 %v236
    %286 = vmatpush1.bf16.msra.mxu0 %v235
    %287 = vmatprep.subr.bf16.mxu0 0
    %288 = vmatpush1.bf16.msra.mxu0 0
    %289 = vmatprep.subr.bf16.mxu0 0
    %290 = vmatpush1.bf16.msra.mxu0 0
    %291 = vmatprep.subr.bf16.mxu0 0
    %292 = vmatpush1.bf16.msra.mxu0 0
    %293 = vmatprep.subr.bf16.mxu0 0
    %294 = vmatpush1.bf16.msra.mxu0 0
    %295 = vmatprep.subr.bf16.mxu0 0
    %296 = vmatpush1.bf16.msra.mxu0 0
    %297 = vmatprep.subr.bf16.mxu0 0
    %298 = vmatpush1.bf16.msra.mxu0 0
    %299 = vmatprep.subr.bf16.mxu0 0
    %300 = vmatpush1.bf16.msra.mxu0 0
    %301 = vmatprep.subr.bf16.mxu0 0
    %302 = vmatpush1.bf16.msra.mxu0 0
    %303 = vmatprep.mubr.bf16.mxu0 0
    %304 = vmatmul.mubr.bf16.gmra.mrb[0].mxu0 %v55
    %v305 = vpop.f32.mrb[0].mxu0
    %v306 = vadd.f32 %v94, %v305
    %v307 = vpop.f32.mrb[0].mxu0
    %v308 = vadd.f32 %v98, %v307
    %v309 = vpop.f32.mrb[0].mxu0
    %v310 = vadd.f32 %v94, %v309
    %v311 = vpop.f32.mrb[0].mxu0
    %v312 = vadd.f32 %v98, %v311
    %313 = vmatprep.mubr.bf16.mxu0 0
    %314 = vmatmul.mubr.bf16.gmra.mrb[0].mxu0 %v56
    %v315 = vpop.f32.mrb[0].mxu0
    %v316 = vadd.f32 %v94, %v315
    %v317 = vpop.f32.mrb[0].mxu0
    %v318 = vadd.f32 %v98, %v317
    %v319 = vpop.f32.mrb[0].mxu0
    %v320 = vadd.f32 %v94, %v319
    %v321 = vpop.f32.mrb[0].mxu0
    %v322 = vadd.f32 %v98, %v321
    %323 = vdwg.mxu0
    %324 = vmatprep.subr.bf16.mxu0 %v210
    %325 = vmatpush1.bf16.msra.mxu0 %v209
    %326 = vmatprep.subr.bf16.mxu0 %v214
    %327 = vmatpush1.bf16.msra.mxu0 %v213
    %328 = vmatprep.subr.bf16.mxu0 %v218
    %329 = vmatpush1.bf16.msra.mxu0 %v217
    %330 = vmatprep.subr.bf16.mxu0 %v222
    %331 = vmatpush1.bf16.msra.mxu0 %v221
    %332 = vmatprep.subr.bf16.mxu0 %v226
    %333 = vmatpush1.bf16.msra.mxu0 %v225
    %334 = vmatprep.subr.bf16.mxu0 %v230
    %335 = vmatpush1.bf16.msra.mxu0 %v229
    %336 = vmatprep.subr.bf16.mxu0 %v234
    %337 = vmatpush1.bf16.msra.mxu0 %v233
    %338 = vmatprep.subr.bf16.mxu0 %v238
    %339 = vmatpush1.bf16.msra.mxu0 %v237
    %340 = vmatprep.subr.bf16.mxu0 0
    %341 = vmatpush1.bf16.msra.mxu0 0
    %342 = vmatprep.subr.bf16.mxu0 0
    %343 = vmatpush1.bf16.msra.mxu0 0
    %344 = vmatprep.subr.bf16.mxu0 0
    %345 = vmatpush1.bf16.msra.mxu0 0
    %346 = vmatprep.subr.bf16.mxu0 0
    %347 = vmatpush1.bf16.msra.mxu0 0
    %348 = vmatprep.subr.bf16.mxu0 0
    %349 = vmatpush1.bf16.msra.mxu0 0
    %350 = vmatprep.subr.bf16.mxu0 0
    %351 = vmatpush1.bf16.msra.mxu0 0
    %352 = vmatprep.subr.bf16.mxu0 0
    %353 = vmatpush1.bf16.msra.mxu0 0
    %354 = vmatprep.subr.bf16.mxu0 0
    %355 = vmatpush1.bf16.msra.mxu0 0
    %356 = vmatprep.mubr.bf16.mxu0 0
    %357 = vmatmul.mubr.bf16.gmra.mrb[0].mxu0 %v55
    %v358 = vpop.f32.mrb[0].mxu0
    %v359 = vadd.f32 %v102, %v358
    %v360 = vpop.f32.mrb[0].mxu0
    %v361 = vadd.f32 %v106, %v360
    %v362 = vpop.f32.mrb[0].mxu0
    %v363 = vadd.f32 %v102, %v362
    %v364 = vpop.f32.mrb[0].mxu0
    %v365 = vadd.f32 %v106, %v364
    %366 = vmatprep.mubr.bf16.mxu0 0
    %367 = vmatmul.mubr.bf16.gmra.mrb[0].mxu0 %v56
    %v368 = vpop.f32.mrb[0].mxu0
    %v369 = vadd.f32 %v102, %v368
    %v370 = vpop.f32.mrb[0].mxu0
    %v371 = vadd.f32 %v106, %v370
    %v372 = vpop.f32.mrb[0].mxu0
    %v373 = vadd.f32 %v102, %v372
    %v374 = vpop.f32.mrb[0].mxu0
    %v375 = vadd.f32 %v106, %v374
    %376 = vdwg.mxu0
    %v377 = vmul.f32 %v306, 0.01
    %v378 = vmul.f32 %v308, 0.01
    %v379 = vmul.f32 %v359, 0.01
    %v380 = vmul.f32 %v361, 0.01
    %v381 = vmul.f32 %v310, 0.01
    %v382 = vmul.f32 %v312, 0.01
    %v383 = vmul.f32 %v363, 0.01
    %v384 = vmul.f32 %v365, 0.01
    %v385 = vmul.f32 %v316, 0.01
    %v386 = vmul.f32 %v318, 0.01
    %v387 = vmul.f32 %v369, 0.01
    %v388 = vmul.f32 %v371, 0.01
    %v389 = vmul.f32 %v320, 0.01
    %v390 = vmul.f32 %v322, 0.01
    %v391 = vmul.f32 %v373, 0.01
    %v392 = vmul.f32 %v375, 0.01
    %v393 = vmax.f32 %v306, %v377
    %v394 = vmax.f32 %v308, %v378
    %v395 = vmax.f32 %v359, %v379
    %v396 = vmax.f32 %v361, %v380
    %v397 = vmax.f32 %v310, %v381
    %v398 = vmax.f32 %v312, %v382
    %v399 = vmax.f32 %v363, %v383
    %v400 = vmax.f32 %v365, %v384
    %v401 = vmax.f32 %v316, %v385
    %v402 = vmax.f32 %v318, %v386
    %v403 = vmax.f32 %v369, %v387
    %v404 = vmax.f32 %v371, %v388
    %v405 = vmax.f32 %v320, %v389
    %v406 = vmax.f32 %v322, %v390
    %v407 = vmax.f32 %v373, %v391
    %v408 = vmax.f32 %v375, %v392
    %v409 = vld [vmem:[%s3] sm:$0xf]
    %v411 = vlaneseq
    %v412 = vshrl.u32 %v411, 7
    %v413 = vsub.s32 0, %v412
    %v414 = vrot.slane %v409, %v413
    %v415 = vlaneseq
    %v416 = vshrl.u32 %v415, 7
    %v417 = vsub.s32 1, %v416
    %v418 = vrot.slane %v409, %v417
    %v419 = vlaneseq
    %v420 = vshrl.u32 %v419, 7
    %v421 = vsub.s32 2, %v420
    %v422 = vrot.slane %v409, %v421
    %v423 = vlaneseq
    %v424 = vshrl.u32 %v423, 7
    %v425 = vsub.s32 3, %v424
    %v426 = vrot.slane %v409, %v425
    %v431 = vmul.f32 %v393, %v414
    %v432 = vmul.f32 %v394, %v418
    %v433 = vmul.f32 %v395, %v422
    %v434 = vmul.f32 %v396, %v426
    %v435 = vmul.f32 %v397, %v414
    %v436 = vmul.f32 %v398, %v418
    %v437 = vmul.f32 %v399, %v422
    %v438 = vmul.f32 %v400, %v426
    %v439 = vmul.f32 %v401, %v414
    %v440 = vmul.f32 %v402, %v418
    %v441 = vmul.f32 %v403, %v422
    %v442 = vmul.f32 %v404, %v426
    %v443 = vmul.f32 %v405, %v414
    %v444 = vmul.f32 %v406, %v418
    %v445 = vmul.f32 %v407, %v422
    %v446 = vmul.f32 %v408, %v426
    %v447 = vadd.f32 %v431, %v432
    %v448 = vadd.f32 %v447, %v433
    %v449 = vadd.f32 %v448, %v434
    %450 = vadd.xlane.f32.xlu0 %v449
    %v451 = vpop.xlane.xlu0 %450
    %v452 = vadd.f32 %v435, %v436
    %v453 = vadd.f32 %v452, %v437
    %v454 = vadd.f32 %v453, %v438
    %455 = vadd.xlane.f32.xlu0 %v454
    %v456 = vpop.xlane.xlu0 %455
    %v457 = vadd.f32 %v439, %v440
    %v458 = vadd.f32 %v457, %v441
    %v459 = vadd.f32 %v458, %v442
    %460 = vadd.xlane.f32.xlu0 %v459
    %v461 = vpop.xlane.xlu0 %460
    %v462 = vadd.f32 %v443, %v444
    %v463 = vadd.f32 %v462, %v445
    %v464 = vadd.f32 %v463, %v446
    %465 = vadd.xlane.f32.xlu0 %v464
    %v466 = vpop.xlane.xlu0 %465
    %v467 = vld [vmem:[#allocation2] sm:$0x1]
    %v469 = vlaneseq
    %v470 = vshrl.u32 %v469, 7
    %v471 = vsub.s32 0, %v470
    %v472 = vrot.slane %v467, %v471
    %v474 = vadd.f32 %v451, %v472
    %v475 = vadd.f32 %v456, %v472
    %v476 = vadd.f32 %v461, %v472
    %v477 = vadd.f32 %v466, %v472
    %v478 = vsub.f32 0.0, %v474
    %v479 = vsub.f32 0.0, %v475
    %v480 = vsub.f32 0.0, %v476
    %v481 = vsub.f32 0.0, %v477
    %v482 = vmul.f32 %v478, 1.442695
    %v483 = vpow.pop %v482
    %v484 = vmul.f32 %v479, 1.442695
    %v485 = vpow.pop %v484
    %v486 = vmul.f32 %v480, 1.442695
    %v487 = vpow.pop %v486
    %v488 = vmul.f32 %v481, 1.442695
    %v489 = vpow.pop %v488
    %v490 = vadd.f32 %v483, 1.0
    %v491 = vadd.f32 %v485, 1.0
    %v492 = vadd.f32 %v487, 1.0
    %v493 = vadd.f32 %v489, 1.0
    %v494 = vrcp.pop %v490
    %v495 = vrcp.pop %v491
    %v496 = vrcp.pop %v492
    %v497 = vrcp.pop %v493
    %vm498 = vcmask 7168
    %499 = vst.msk [vmem:[%s5] sm:$0xff] %vm498, %v494
    %500 = vst.msk [vmem:[%s5 + $0x8] sm:$0xff] %vm498, %v495
    %501 = vst.msk [vmem:[%s5 + $0x10] sm:$0xff] %vm498, %v496
    %502 = vst.msk [vmem:[%s5 + $0x18] sm:$0xff] %vm498, %v497
    // Predicated region
    $region30: #{tpu_custom_call.1} parent=1 // pred_check
      _
    $region31: #{tpu_custom_call.1} parent=1 // pred_check_branch
      %504 = sbr.rel (0) target = $region33
    $region32: #{tpu_custom_call.1} parent=1 // pred_region
      _
    $region33: #{tpu_custom_call.1} parent=1 // pred_fallthru
      _
    // Predicated region
    $region34: #{tpu_custom_call.1} parent=1 // pred_check
      _
    $region35: #{tpu_custom_call.1} parent=1 // pred_check_branch
      %506 = sbr.rel (0) target = $region37
    $region36: #{tpu_custom_call.1} parent=1 // pred_region
      _
    $region37: #{tpu_custom_call.1} parent=1 // pred_fallthru
      _
    %507 = vsyncpa [#allocation4], 1
    %508 = vsyncpa [#allocation6], 1

</llo_original>
